<compile_context>
chip_gen: v5e
topology: v5e:2x2
jax: 0.10.0
libtpu: 0.0.40
codegen_flags: <defaults>
</compile_context>

<pallas_src>
import jax
import jax.numpy as jnp
from jax.experimental import pallas as pl
from jax.experimental.pallas import tpu as pltpu

SUB = 8            # sublanes of a f32 vreg
LANE = 128         # lanes of a vreg
CHUNK_LANES = 512  # inner-loop chunk: (8, 512) f32 = 4 vregs per array
TL_MAX = 8192      # max lanes per grid tile (= 65536 batch rows)


def _round_up(a, m):
    return ((a + m - 1) // m) * m


def risk_mlp_kernel(x_ref, w1_ref, b1_ref, w2h_ref, b2h_ref, o_ref):
    # x_ref: (3, 8, TL) f32 in VMEM, batch on (sublane, lane).
    # w1_ref (3,8), b1_ref (8,), w2h_ref (8,) = 0.5*w2, b2h_ref (1,) = 0.5*b2,
    # all f32 scalars in SMEM.  o_ref: (8, TL) f32.
    tl = o_ref.shape[-1]
    chunk = min(CHUNK_LANES, tl)     # wrapper guarantees chunk | tl
    n_chunks = tl // chunk

    @pl.loop(0, n_chunks)
    def _(c):
        off = pl.multiple_of(c * chunk, chunk)
        x0 = x_ref[0, :, pl.ds(off, chunk)]          # (8, chunk)
        x1 = x_ref[1, :, pl.ds(off, chunk)]
        x2 = x_ref[2, :, pl.ds(off, chunk)]

        # zh accumulates 0.5 * z so the sigmoid tail is a single tanh.
        zh = jnp.full_like(x0, b2h_ref[0])
        for j in range(8):                           # unrolled at trace time
            h = (b1_ref[j]
                 + w1_ref[0, j] * x0
                 + w1_ref[1, j] * x1
                 + w1_ref[2, j] * x2)
            h = jnp.maximum(h, 0.0)                  # ReLU (VPU)
            zh = zh + w2h_ref[j] * h

        # sigmoid(z) = 0.5 + 0.5 * tanh(0.5 * z)  (one EUP op, dense store)
        o_ref[:, pl.ds(off, chunk)] = 0.5 + 0.5 * jnp.tanh(zh)


def risk_model_forward(x, w1, b1, w2, b2):
    """x: (B, 3); w1: (3, 8); b1: (1, 8); w2: (8, 1); b2: (1, 1) -> (B, 1)."""
    B = x.shape[0]
    L_need = pl.cdiv(B, SUB)                 # lanes needed per sublane row

    if L_need <= 2 * LANE:
        # Tiny batch: one tile, minimal 128-lane rounding.
        L_pad = _round_up(L_need, LANE)
        tl = L_pad
    else:
        # Pad only to the 512-lane chunk granularity (<= ~4K wasted rows) and
        # cap the tile so the grid has >= 2 steps (v7x megacore sharding).
        L_pad = _round_up(L_need, CHUNK_LANES)
        tl = min(TL_MAX, _round_up(pl.cdiv(L_pad, 2), CHUNK_LANES))

    n_tiles = pl.cdiv(L_pad, tl)             # last block may be partial
    b_pad = SUB * L_pad

    # Lane/sublane-dense layout: b = s * L_pad + l.
    # TODO(synk): accepting feature-major (3, B) input from the caller would
    # remove this transpose pass entirely.
    xT = jnp.pad(x.astype(jnp.float32).T, ((0, 0), (0, b_pad - B)))
    x2d = xT.reshape(3, SUB, L_pad)

    w1f = w1.astype(jnp.float32)                       # (3, 8)
    b1f = b1.astype(jnp.float32).reshape(8)            # (8,)
    w2hf = (0.5 * w2.astype(jnp.float32)).reshape(8)   # (8,)  = 0.5 * w2
    b2hf = (0.5 * b2.astype(jnp.float32)).reshape(1)   # (1,)  = 0.5 * b2

    o2d = pl.pallas_call(
        risk_mlp_kernel,
        out_shape=jax.ShapeDtypeStruct((SUB, L_pad), jnp.float32),
        grid_spec=pltpu.PrefetchScalarGridSpec(
            num_scalar_prefetch=0,
            grid=(n_tiles,),
            in_specs=[
                pl.BlockSpec((3, SUB, tl), lambda i: (0, 0, i)),      # activations
                pl.BlockSpec(memory_space=pltpu.MemorySpace.SMEM),    # w1
                pl.BlockSpec(memory_space=pltpu.MemorySpace.SMEM),    # b1
                pl.BlockSpec(memory_space=pltpu.MemorySpace.SMEM),    # 0.5*w2
                pl.BlockSpec(memory_space=pltpu.MemorySpace.SMEM),    # 0.5*b2
            ],
            out_specs=pl.BlockSpec((SUB, tl), lambda i: (0, i)),
        ),
        compiler_params=pltpu.CompilerParams(
            dimension_semantics=("parallel",),   # shard batch tiles across TCs
        ),
    )(x2d, w1f, b1f, w2hf, b2hf)

    return o2d.reshape(-1)[:B].reshape(B, 1)


def init_params(key):
    # Deterministic synthetic init mirroring nn.Linear shapes:
    #   fc[0]: Linear(3, 8)  -> W1 (3, 8), b1 (1, 8)
    #   fc[2]: Linear(8, 1)  -> W2 (8, 1), b2 (1, 1)
    k1, k2, k3, k4 = jax.random.split(key, 4)
    w1 = jax.random.normal(k1, (3, 8), jnp.float32) * 0.5
    b1 = jax.random.normal(k2, (1, 8), jnp.float32) * 0.1
    w2 = jax.random.normal(k3, (8, 1), jnp.float32) * 0.5
    b2 = jax.random.normal(k4, (1, 1), jnp.float32) * 0.1
    return w1, b1, w2, b2


if __name__ == "__main__":
    key = jax.random.PRNGKey(0)
    kx, kp = jax.random.split(key)
    batch = 8
    x = jax.random.normal(kx, (batch, 3), jnp.float32)
    w1, b1, w2, b2 = init_params(kp)

    fwd = jax.jit(risk_model_forward)
    out = jax.block_until_ready(fwd(x, w1, b1, w2, b2))

    # Reference check in plain JAX (same math as the PyTorch module).
    ref = jax.nn.sigmoid(jnp.maximum(x @ w1 + b1, 0.0) @ w2 + b2)
    assert out.shape == (batch, 1)
    assert jnp.allclose(out, ref, atol=2e-3), "mismatch vs reference"

    print("KERNEL_OK")
</pallas_src>

<mosaic_0001>
module attributes {stable_mosaic.version = 11 : i64} {
  func.func @risk_mlp_kernel(%arg0: i32, %arg1: memref<3x8x128xf32, #tpu.memory_space<vmem>>, %arg2: memref<3x8xf32, #tpu.memory_space<smem>>, %arg3: memref<8xf32, #tpu.memory_space<smem>>, %arg4: memref<8xf32, #tpu.memory_space<smem>>, %arg5: memref<1xf32, #tpu.memory_space<smem>>, %arg6: memref<8x128xf32, #tpu.memory_space<vmem>>) attributes {dimension_semantics = [#tpu.dimension_semantics<parallel>], iteration_bounds = array<i64: 1>, scalar_prefetch = 0 : i64, scratch_operands = 0 : i64, tpu.core_type = #tpu.core_type<tc>, window_params = [{transform_indices = @transform_0, window_bounds = array<i64: 3, 8, 128>}, {transform_indices = @transform_1, window_bounds = array<i64: 3, 8>}, {transform_indices = @transform_2, window_bounds = array<i64: 8>}, {transform_indices = @transform_3, window_bounds = array<i64: 8>}, {transform_indices = @transform_4, window_bounds = array<i64: 1>}, {transform_indices = @transform_5, window_bounds = array<i64: 8, 128>}]} {
    %c0_i32 = arith.constant 0 : i32
    %c1_i32 = arith.constant 1 : i32
    %0 = arith.muli %c0_i32, %c1_i32 : i32
    %c0_i32_0 = arith.constant 0 : i32
    %1 = arith.addi %c0_i32_0, %0 : i32
    %c128_i32 = arith.constant 128 : i32
    %2 = arith.muli %1, %c128_i32 : i32
    %3 = tpu.assume_multiple %2, 128 : i32
    %c0 = arith.constant 0 : index
    %c0_1 = arith.constant 0 : index
    %4 = arith.index_cast %3 : i32 to index
    %5 = vector.load %arg1[%c0, %c0_1, %4] : memref<3x8x128xf32, #tpu.memory_space<vmem>>, vector<1x8x128xf32>
    %6 = vector.shape_cast %5 : vector<1x8x128xf32> to vector<8x128xf32>
    %c1 = arith.constant 1 : index
    %c0_2 = arith.constant 0 : index
    %7 = arith.index_cast %3 : i32 to index
    %8 = vector.load %arg1[%c1, %c0_2, %7] : memref<3x8x128xf32, #tpu.memory_space<vmem>>, vector<1x8x128xf32>
    %9 = vector.shape_cast %8 : vector<1x8x128xf32> to vector<8x128xf32>
    %c2 = arith.constant 2 : index
    %c0_3 = arith.constant 0 : index
    %10 = arith.index_cast %3 : i32 to index
    %11 = vector.load %arg1[%c2, %c0_3, %10] : memref<3x8x128xf32, #tpu.memory_space<vmem>>, vector<1x8x128xf32>
    %12 = vector.shape_cast %11 : vector<1x8x128xf32> to vector<8x128xf32>
    %c0_4 = arith.constant 0 : index
    %13 = memref.load %arg5[%c0_4] : memref<1xf32, #tpu.memory_space<smem>>
    %14 = vector.broadcast %13 : f32 to vector<8x128xf32>
    %c0_5 = arith.constant 0 : index
    %15 = memref.load %arg3[%c0_5] : memref<8xf32, #tpu.memory_space<smem>>
    %c0_6 = arith.constant 0 : index
    %c0_7 = arith.constant 0 : index
    %16 = memref.load %arg2[%c0_6, %c0_7] : memref<3x8xf32, #tpu.memory_space<smem>>
    %17 = vector.broadcast %16 : f32 to vector<8x128xf32>
    %18 = arith.mulf %17, %6 : vector<8x128xf32>
    %19 = vector.broadcast %15 : f32 to vector<8x128xf32>
    %20 = arith.addf %19, %18 : vector<8x128xf32>
    %c1_8 = arith.constant 1 : index
    %c0_9 = arith.constant 0 : index
    %21 = memref.load %arg2[%c1_8, %c0_9] : memref<3x8xf32, #tpu.memory_space<smem>>
    %22 = vector.broadcast %21 : f32 to vector<8x128xf32>
    %23 = arith.mulf %22, %9 : vector<8x128xf32>
    %24 = arith.addf %20, %23 : vector<8x128xf32>
    %c2_10 = arith.constant 2 : index
    %c0_11 = arith.constant 0 : index
    %25 = memref.load %arg2[%c2_10, %c0_11] : memref<3x8xf32, #tpu.memory_space<smem>>
    %26 = vector.broadcast %25 : f32 to vector<8x128xf32>
    %27 = arith.mulf %26, %12 : vector<8x128xf32>
    %28 = arith.addf %24, %27 : vector<8x128xf32>
    %cst = arith.constant 0.000000e+00 : f32
    %29 = vector.broadcast %cst : f32 to vector<8x128xf32>
    %30 = arith.maximumf %28, %29 : vector<8x128xf32>
    %c0_12 = arith.constant 0 : index
    %31 = memref.load %arg4[%c0_12] : memref<8xf32, #tpu.memory_space<smem>>
    %32 = vector.broadcast %31 : f32 to vector<8x128xf32>
    %33 = arith.mulf %32, %30 : vector<8x128xf32>
    %34 = arith.addf %14, %33 : vector<8x128xf32>
    %c1_13 = arith.constant 1 : index
    %35 = memref.load %arg3[%c1_13] : memref<8xf32, #tpu.memory_space<smem>>
    %c0_14 = arith.constant 0 : index
    %c1_15 = arith.constant 1 : index
    %36 = memref.load %arg2[%c0_14, %c1_15] : memref<3x8xf32, #tpu.memory_space<smem>>
    %37 = vector.broadcast %36 : f32 to vector<8x128xf32>
    %38 = arith.mulf %37, %6 : vector<8x128xf32>
    %39 = vector.broadcast %35 : f32 to vector<8x128xf32>
    %40 = arith.addf %39, %38 : vector<8x128xf32>
    %c1_16 = arith.constant 1 : index
    %c1_17 = arith.constant 1 : index
    %41 = memref.load %arg2[%c1_16, %c1_17] : memref<3x8xf32, #tpu.memory_space<smem>>
    %42 = vector.broadcast %41 : f32 to vector<8x128xf32>
    %43 = arith.mulf %42, %9 : vector<8x128xf32>
    %44 = arith.addf %40, %43 : vector<8x128xf32>
    %c2_18 = arith.constant 2 : index
    %c1_19 = arith.constant 1 : index
    %45 = memref.load %arg2[%c2_18, %c1_19] : memref<3x8xf32, #tpu.memory_space<smem>>
    %46 = vector.broadcast %45 : f32 to vector<8x128xf32>
    %47 = arith.mulf %46, %12 : vector<8x128xf32>
    %48 = arith.addf %44, %47 : vector<8x128xf32>
    %cst_20 = arith.constant 0.000000e+00 : f32
    %49 = vector.broadcast %cst_20 : f32 to vector<8x128xf32>
    %50 = arith.maximumf %48, %49 : vector<8x128xf32>
    %c1_21 = arith.constant 1 : index
    %51 = memref.load %arg4[%c1_21] : memref<8xf32, #tpu.memory_space<smem>>
    %52 = vector.broadcast %51 : f32 to vector<8x128xf32>
    %53 = arith.mulf %52, %50 : vector<8x128xf32>
    %54 = arith.addf %34, %53 : vector<8x128xf32>
    %c2_22 = arith.constant 2 : index
    %55 = memref.load %arg3[%c2_22] : memref<8xf32, #tpu.memory_space<smem>>
    %c0_23 = arith.constant 0 : index
    %c2_24 = arith.constant 2 : index
    %56 = memref.load %arg2[%c0_23, %c2_24] : memref<3x8xf32, #tpu.memory_space<smem>>
    %57 = vector.broadcast %56 : f32 to vector<8x128xf32>
    %58 = arith.mulf %57, %6 : vector<8x128xf32>
    %59 = vector.broadcast %55 : f32 to vector<8x128xf32>
    %60 = arith.addf %59, %58 : vector<8x128xf32>
    %c1_25 = arith.constant 1 : index
    %c2_26 = arith.constant 2 : index
    %61 = memref.load %arg2[%c1_25, %c2_26] : memref<3x8xf32, #tpu.memory_space<smem>>
    %62 = vector.broadcast %61 : f32 to vector<8x128xf32>
    %63 = arith.mulf %62, %9 : vector<8x128xf32>
    %64 = arith.addf %60, %63 : vector<8x128xf32>
    %c2_27 = arith.constant 2 : index
    %c2_28 = arith.constant 2 : index
    %65 = memref.load %arg2[%c2_27, %c2_28] : memref<3x8xf32, #tpu.memory_space<smem>>
    %66 = vector.broadcast %65 : f32 to vector<8x128xf32>
    %67 = arith.mulf %66, %12 : vector<8x128xf32>
    %68 = arith.addf %64, %67 : vector<8x128xf32>
    %cst_29 = arith.constant 0.000000e+00 : f32
    %69 = vector.broadcast %cst_29 : f32 to vector<8x128xf32>
    %70 = arith.maximumf %68, %69 : vector<8x128xf32>
    %c2_30 = arith.constant 2 : index
    %71 = memref.load %arg4[%c2_30] : memref<8xf32, #tpu.memory_space<smem>>
    %72 = vector.broadcast %71 : f32 to vector<8x128xf32>
    %73 = arith.mulf %72, %70 : vector<8x128xf32>
    %74 = arith.addf %54, %73 : vector<8x128xf32>
    %c3 = arith.constant 3 : index
    %75 = memref.load %arg3[%c3] : memref<8xf32, #tpu.memory_space<smem>>
    %c0_31 = arith.constant 0 : index
    %c3_32 = arith.constant 3 : index
    %76 = memref.load %arg2[%c0_31, %c3_32] : memref<3x8xf32, #tpu.memory_space<smem>>
    %77 = vector.broadcast %76 : f32 to vector<8x128xf32>
    %78 = arith.mulf %77, %6 : vector<8x128xf32>
    %79 = vector.broadcast %75 : f32 to vector<8x128xf32>
    %80 = arith.addf %79, %78 : vector<8x128xf32>
    %c1_33 = arith.constant 1 : index
    %c3_34 = arith.constant 3 : index
    %81 = memref.load %arg2[%c1_33, %c3_34] : memref<3x8xf32, #tpu.memory_space<smem>>
    %82 = vector.broadcast %81 : f32 to vector<8x128xf32>
    %83 = arith.mulf %82, %9 : vector<8x128xf32>
    %84 = arith.addf %80, %83 : vector<8x128xf32>
    %c2_35 = arith.constant 2 : index
    %c3_36 = arith.constant 3 : index
    %85 = memref.load %arg2[%c2_35, %c3_36] : memref<3x8xf32, #tpu.memory_space<smem>>
    %86 = vector.broadcast %85 : f32 to vector<8x128xf32>
    %87 = arith.mulf %86, %12 : vector<8x128xf32>
    %88 = arith.addf %84, %87 : vector<8x128xf32>
    %cst_37 = arith.constant 0.000000e+00 : f32
    %89 = vector.broadcast %cst_37 : f32 to vector<8x128xf32>
    %90 = arith.maximumf %88, %89 : vector<8x128xf32>
    %c3_38 = arith.constant 3 : index
    %91 = memref.load %arg4[%c3_38] : memref<8xf32, #tpu.memory_space<smem>>
    %92 = vector.broadcast %91 : f32 to vector<8x128xf32>
    %93 = arith.mulf %92, %90 : vector<8x128xf32>
    %94 = arith.addf %74, %93 : vector<8x128xf32>
    %c4 = arith.constant 4 : index
    %95 = memref.load %arg3[%c4] : memref<8xf32, #tpu.memory_space<smem>>
    %c0_39 = arith.constant 0 : index
    %c4_40 = arith.constant 4 : index
    %96 = memref.load %arg2[%c0_39, %c4_40] : memref<3x8xf32, #tpu.memory_space<smem>>
    %97 = vector.broadcast %96 : f32 to vector<8x128xf32>
    %98 = arith.mulf %97, %6 : vector<8x128xf32>
    %99 = vector.broadcast %95 : f32 to vector<8x128xf32>
    %100 = arith.addf %99, %98 : vector<8x128xf32>
    %c1_41 = arith.constant 1 : index
    %c4_42 = arith.constant 4 : index
    %101 = memref.load %arg2[%c1_41, %c4_42] : memref<3x8xf32, #tpu.memory_space<smem>>
    %102 = vector.broadcast %101 : f32 to vector<8x128xf32>
    %103 = arith.mulf %102, %9 : vector<8x128xf32>
    %104 = arith.addf %100, %103 : vector<8x128xf32>
    %c2_43 = arith.constant 2 : index
    %c4_44 = arith.constant 4 : index
    %105 = memref.load %arg2[%c2_43, %c4_44] : memref<3x8xf32, #tpu.memory_space<smem>>
    %106 = vector.broadcast %105 : f32 to vector<8x128xf32>
    %107 = arith.mulf %106, %12 : vector<8x128xf32>
    %108 = arith.addf %104, %107 : vector<8x128xf32>
    %cst_45 = arith.constant 0.000000e+00 : f32
    %109 = vector.broadcast %cst_45 : f32 to vector<8x128xf32>
    %110 = arith.maximumf %108, %109 : vector<8x128xf32>
    %c4_46 = arith.constant 4 : index
    %111 = memref.load %arg4[%c4_46] : memref<8xf32, #tpu.memory_space<smem>>
    %112 = vector.broadcast %111 : f32 to vector<8x128xf32>
    %113 = arith.mulf %112, %110 : vector<8x128xf32>
    %114 = arith.addf %94, %113 : vector<8x128xf32>
    %c5 = arith.constant 5 : index
    %115 = memref.load %arg3[%c5] : memref<8xf32, #tpu.memory_space<smem>>
    %c0_47 = arith.constant 0 : index
    %c5_48 = arith.constant 5 : index
    %116 = memref.load %arg2[%c0_47, %c5_48] : memref<3x8xf32, #tpu.memory_space<smem>>
    %117 = vector.broadcast %116 : f32 to vector<8x128xf32>
    %118 = arith.mulf %117, %6 : vector<8x128xf32>
    %119 = vector.broadcast %115 : f32 to vector<8x128xf32>
    %120 = arith.addf %119, %118 : vector<8x128xf32>
    %c1_49 = arith.constant 1 : index
    %c5_50 = arith.constant 5 : index
    %121 = memref.load %arg2[%c1_49, %c5_50] : memref<3x8xf32, #tpu.memory_space<smem>>
    %122 = vector.broadcast %121 : f32 to vector<8x128xf32>
    %123 = arith.mulf %122, %9 : vector<8x128xf32>
    %124 = arith.addf %120, %123 : vector<8x128xf32>
    %c2_51 = arith.constant 2 : index
    %c5_52 = arith.constant 5 : index
    %125 = memref.load %arg2[%c2_51, %c5_52] : memref<3x8xf32, #tpu.memory_space<smem>>
    %126 = vector.broadcast %125 : f32 to vector<8x128xf32>
    %127 = arith.mulf %126, %12 : vector<8x128xf32>
    %128 = arith.addf %124, %127 : vector<8x128xf32>
    %cst_53 = arith.constant 0.000000e+00 : f32
    %129 = vector.broadcast %cst_53 : f32 to vector<8x128xf32>
    %130 = arith.maximumf %128, %129 : vector<8x128xf32>
    %c5_54 = arith.constant 5 : index
    %131 = memref.load %arg4[%c5_54] : memref<8xf32, #tpu.memory_space<smem>>
    %132 = vector.broadcast %131 : f32 to vector<8x128xf32>
    %133 = arith.mulf %132, %130 : vector<8x128xf32>
    %134 = arith.addf %114, %133 : vector<8x128xf32>
    %c6 = arith.constant 6 : index
    %135 = memref.load %arg3[%c6] : memref<8xf32, #tpu.memory_space<smem>>
    %c0_55 = arith.constant 0 : index
    %c6_56 = arith.constant 6 : index
    %136 = memref.load %arg2[%c0_55, %c6_56] : memref<3x8xf32, #tpu.memory_space<smem>>
    %137 = vector.broadcast %136 : f32 to vector<8x128xf32>
    %138 = arith.mulf %137, %6 : vector<8x128xf32>
    %139 = vector.broadcast %135 : f32 to vector<8x128xf32>
    %140 = arith.addf %139, %138 : vector<8x128xf32>
    %c1_57 = arith.constant 1 : index
    %c6_58 = arith.constant 6 : index
    %141 = memref.load %arg2[%c1_57, %c6_58] : memref<3x8xf32, #tpu.memory_space<smem>>
    %142 = vector.broadcast %141 : f32 to vector<8x128xf32>
    %143 = arith.mulf %142, %9 : vector<8x128xf32>
    %144 = arith.addf %140, %143 : vector<8x128xf32>
    %c2_59 = arith.constant 2 : index
    %c6_60 = arith.constant 6 : index
    %145 = memref.load %arg2[%c2_59, %c6_60] : memref<3x8xf32, #tpu.memory_space<smem>>
    %146 = vector.broadcast %145 : f32 to vector<8x128xf32>
    %147 = arith.mulf %146, %12 : vector<8x128xf32>
    %148 = arith.addf %144, %147 : vector<8x128xf32>
    %cst_61 = arith.constant 0.000000e+00 : f32
    %149 = vector.broadcast %cst_61 : f32 to vector<8x128xf32>
    %150 = arith.maximumf %148, %149 : vector<8x128xf32>
    %c6_62 = arith.constant 6 : index
    %151 = memref.load %arg4[%c6_62] : memref<8xf32, #tpu.memory_space<smem>>
    %152 = vector.broadcast %151 : f32 to vector<8x128xf32>
    %153 = arith.mulf %152, %150 : vector<8x128xf32>
    %154 = arith.addf %134, %153 : vector<8x128xf32>
    %c7 = arith.constant 7 : index
    %155 = memref.load %arg3[%c7] : memref<8xf32, #tpu.memory_space<smem>>
    %c0_63 = arith.constant 0 : index
    %c7_64 = arith.constant 7 : index
    %156 = memref.load %arg2[%c0_63, %c7_64] : memref<3x8xf32, #tpu.memory_space<smem>>
    %157 = vector.broadcast %156 : f32 to vector<8x128xf32>
    %158 = arith.mulf %157, %6 : vector<8x128xf32>
    %159 = vector.broadcast %155 : f32 to vector<8x128xf32>
    %160 = arith.addf %159, %158 : vector<8x128xf32>
    %c1_65 = arith.constant 1 : index
    %c7_66 = arith.constant 7 : index
    %161 = memref.load %arg2[%c1_65, %c7_66] : memref<3x8xf32, #tpu.memory_space<smem>>
    %162 = vector.broadcast %161 : f32 to vector<8x128xf32>
    %163 = arith.mulf %162, %9 : vector<8x128xf32>
    %164 = arith.addf %160, %163 : vector<8x128xf32>
    %c2_67 = arith.constant 2 : index
    %c7_68 = arith.constant 7 : index
    %165 = memref.load %arg2[%c2_67, %c7_68] : memref<3x8xf32, #tpu.memory_space<smem>>
    %166 = vector.broadcast %165 : f32 to vector<8x128xf32>
    %167 = arith.mulf %166, %12 : vector<8x128xf32>
    %168 = arith.addf %164, %167 : vector<8x128xf32>
    %cst_69 = arith.constant 0.000000e+00 : f32
    %169 = vector.broadcast %cst_69 : f32 to vector<8x128xf32>
    %170 = arith.maximumf %168, %169 : vector<8x128xf32>
    %c7_70 = arith.constant 7 : index
    %171 = memref.load %arg4[%c7_70] : memref<8xf32, #tpu.memory_space<smem>>
    %172 = vector.broadcast %171 : f32 to vector<8x128xf32>
    %173 = arith.mulf %172, %170 : vector<8x128xf32>
    %174 = arith.addf %154, %173 : vector<8x128xf32>
    %175 = math.tanh %174 : vector<8x128xf32>
    %cst_71 = arith.constant 5.000000e-01 : f32
    %176 = vector.broadcast %cst_71 : f32 to vector<8x128xf32>
    %177 = arith.mulf %176, %175 : vector<8x128xf32>
    %cst_72 = arith.constant 5.000000e-01 : f32
    %178 = vector.broadcast %cst_72 : f32 to vector<8x128xf32>
    %179 = arith.addf %178, %177 : vector<8x128xf32>
    %c0_73 = arith.constant 0 : index
    %180 = arith.index_cast %3 : i32 to index
    %181 = vector.load %arg6[%c0_73, %180] : memref<8x128xf32, #tpu.memory_space<vmem>>, vector<8x128xf32>
    tpu.vector_store %arg6[%c0_73, %180], %179 {strides = array<i32>} : memref<8x128xf32, #tpu.memory_space<vmem>>, vector<8x128xf32>,
    %c1_i32_74 = arith.constant 1 : i32
    return
  }
  func.func @transform_0(%arg0: i32) -> (i32, i32, i32) {
    %c0_i32 = arith.constant 0 : i32
    %c0_i32_0 = arith.constant 0 : i32
    %c0_i32_1 = arith.constant 0 : i32
    return %c0_i32, %c0_i32_0, %arg0 : i32, i32, i32
  }
  func.func @transform_1(%arg0: i32) -> (i32, i32) {
    %c0_i32 = arith.constant 0 : i32
    %c0_i32_0 = arith.constant 0 : i32
    %c0_i32_1 = arith.constant 0 : i32
    return %c0_i32, %c0_i32_0 : i32, i32
  }
  func.func @transform_2(%arg0: i32) -> i32 {
    %c0_i32 = arith.constant 0 : i32
    %c0_i32_0 = arith.constant 0 : i32
    return %c0_i32 : i32
  }
  func.func @transform_3(%arg0: i32) -> i32 {
    %c0_i32 = arith.constant 0 : i32
    %c0_i32_0 = arith.constant 0 : i32
    return %c0_i32 : i32
  }
  func.func @transform_4(%arg0: i32) -> i32 {
    %c0_i32 = arith.constant 0 : i32
    %c0_i32_0 = arith.constant 0 : i32
    return %c0_i32 : i32
  }
  func.func @transform_5(%arg0: i32) -> (i32, i32) {
    %c0_i32 = arith.constant 0 : i32
    %c0_i32_0 = arith.constant 0 : i32
    return %c0_i32, %arg0 : i32, i32
  }
}

</mosaic_0001>

<llo_original>
// kernel: risk_model_forward.1
$region0: #{risk_model_forward.1}
  #allocation0 [shape = 'u32[]', space=smem, size = 0x4, offset = 0x4, fixed_abs, tag = 'smem constant byte address 0x4 - core index']
  #allocation1 [shape = 'u32[72,128]{1,0:T(1,128)}', space=vmem, size = 0x9000, scoped, tag = 'internal scratch']
  #allocation2 [shape = 'f32[1]{0:T(128)S(6)}', space=smem, size = 0x200, scoped, tag = 'scoped memory for risk_model_forward.1']
  %s0 = inlined_call_operand.vmem [shape: f32[3,8,128], index: 0, kind: input, shape index: {}]
  %s1 = inlined_call_operand.vmem [shape: f32[3,8], index: 1, kind: input, shape index: {}]
  %s2 = inlined_call_operand.vmem [shape: f32[8], index: 2, kind: input, shape index: {}]
  %s3 = inlined_call_operand.vmem [shape: f32[8], index: 3, kind: input, shape index: {}]
  %s4 = inlined_call_operand.<no memory space> [shape: f32[1], index: 4, kind: input, shape index: {}]
  %s5 = inlined_call_operand.vmem [shape: f32[8,128], index: 5, kind: output, shape index: {}]
  %s6 = sld [smem:[#allocation0]]
  $region42: #{risk_model_forward.1} parent=0
    _
  %s8 = ssub.s32 1, %s6
  %s9 = scalar_select 0, %s8, %s6
  %10 = sst [smem:[#allocation2]] %s4
  $region1: #{risk_model_forward.1} parent=0
    #allocation3 [shape = 'u8[2048]{0}', space=smem, size = 0x800, scoped, tag = 'input window, operand 1, single buffered']
    #allocation4 [shape = 's32[1]{0}', space=sflag, size = 0x4, scoped, tag = 'scoped memory for risk_model_forward.1']
    #allocation5 [shape = 'u8[512]{0}', space=smem, size = 0x200, scoped, tag = 'input window, operand 2, single buffered']
    #allocation6 [shape = 's32[1]{0}', space=sflag, size = 0x4, scoped, tag = 'scoped memory for risk_model_forward.1']
    #allocation7 [shape = 'u8[512]{0}', space=smem, size = 0x200, scoped, tag = 'input window, operand 3, single buffered']
    %11 = vsyncpa [#allocation4], 0
    %12 = vsyncpa [#allocation6], 0
    // Predicated region
    $region2: #{risk_model_forward.1} parent=1 // pred_check
      _
    $region3: #{risk_model_forward.1} parent=1 // pred_check_branch
      %14 = sbr.rel (0) target = $region5
    $region4: #{risk_model_forward.1} parent=1 // pred_region
      _
    $region5: #{risk_model_forward.1} parent=1 // pred_fallthru
      _
    // Predicated region
    $region6: #{risk_model_forward.1} parent=1 // pred_check
      _
    $region7: #{risk_model_forward.1} parent=1 // pred_check_branch
      %16 = sbr.rel (0) target = $region9
    $region8: #{risk_model_forward.1} parent=1 // pred_region
      %18 = vsyncadd [#allocation4], 0
      %s20 = sshll.u32 %s1, 4
      %s21 = int_to_ptr.vmem [resolvable:$true] %s20
      %23 = dma.vmem_to_smem %s21, 64, [#allocation3], [#allocation4]
    $region9: #{risk_model_forward.1} parent=1 // pred_fallthru
      _
    // Predicated region
    $region10: #{risk_model_forward.1} parent=1 // pred_check
      _
    $region11: #{risk_model_forward.1} parent=1 // pred_check_branch
      %25 = sbr.rel (0) target = $region13
    $region12: #{risk_model_forward.1} parent=1 // pred_region
      %27 = vsyncadd [#allocation6], 0
      %s29 = sshll.u32 %s2, 4
      %s30 = int_to_ptr.vmem [resolvable:$true] %s29
      %32 = dma.vmem_to_smem %s30, 16, [#allocation5], [#allocation6]
    $region13: #{risk_model_forward.1} parent=1 // pred_fallthru
      _
    // Predicated region
    $region14: #{risk_model_forward.1} parent=1 // pred_check
      _
    $region15: #{risk_model_forward.1} parent=1 // pred_check_branch
      %34 = sbr.rel (0) target = $region17
    $region16: #{risk_model_forward.1} parent=1 // pred_region
      %36 = vsyncadd [#allocation6], 0
      %s38 = sshll.u32 %s3, 4
      %s39 = int_to_ptr.vmem [resolvable:$true] %s38
      %41 = dma.vmem_to_smem %s39, 16, [#allocation7], [#allocation6]
    $region17: #{risk_model_forward.1} parent=1 // pred_fallthru
      _
    // Predicated region
    $region18: #{risk_model_forward.1} parent=1 // pred_check
      _
    $region19: #{risk_model_forward.1} parent=1 // pred_check_branch
      %43 = sbr.rel (0) target = $region21
    $region20: #{risk_model_forward.1} parent=1 // pred_region
      _
    $region21: #{risk_model_forward.1} parent=1 // pred_fallthru
      _
    // Predicated region
    $region22: #{risk_model_forward.1} parent=1 // pred_check
      _
    $region23: #{risk_model_forward.1} parent=1 // pred_check_branch
      %45 = sbr.rel (0) target = $region25
    $region24: #{risk_model_forward.1} parent=1 // pred_region
      %47 = dma.done [#allocation4], 64
    $region25: #{risk_model_forward.1} parent=1 // pred_fallthru
      _
    // Predicated region
    $region26: #{risk_model_forward.1} parent=1 // pred_check
      _
    $region27: #{risk_model_forward.1} parent=1 // pred_check_branch
      %49 = sbr.rel (0) target = $region29
    $region28: #{risk_model_forward.1} parent=1 // pred_region
      %51 = dma.done [#allocation6], 16
    $region29: #{risk_model_forward.1} parent=1 // pred_fallthru
      _
    // Predicated region
    $region30: #{risk_model_forward.1} parent=1 // pred_check
      _
    $region31: #{risk_model_forward.1} parent=1 // pred_check_branch
      %53 = sbr.rel (0) target = $region33
    $region32: #{risk_model_forward.1} parent=1 // pred_region
      %55 = dma.done [#allocation6], 16
    $region33: #{risk_model_forward.1} parent=1 // pred_fallthru
      _
    %56 = sfence
    %v57 = vld [vmem:[%s0] sm:$0xff]
    %s58 = sadd.s32 0, 8
    %s59 = scalar_lea.vmem %s0, %s58
    %v60 = vld [vmem:[%s59] sm:$0xff]
    %s61 = sadd.s32 0, 16
    %s62 = scalar_lea.vmem %s0, %s61
    %v63 = vld [vmem:[%s62] sm:$0xff]
    %s64 = sld [smem:[#allocation2]]
    %v65 = vstv %s64
    %s66 = sld [smem:[#allocation5]]
    %s67 = sld [smem:[#allocation3]]
    %v68 = vstv %s67
    %v69 = vmul.f32 %v68, %v57
    %v70 = vstv %s66
    %v71 = vadd.f32 %v70, %v69
    %s72 = sld [smem:[#allocation3 + $0x80]]
    %v73 = vstv %s72
    %v74 = vmul.f32 %v73, %v60
    %v75 = vadd.f32 %v71, %v74
    %s76 = sld [smem:[#allocation3 + $0x100]]
    %v77 = vstv %s76
    %v78 = vmul.f32 %v77, %v63
    %v79 = vadd.f32 %v75, %v78
    %v80 = vmax.f32 %v79, 0.0
    %s81 = sld [smem:[#allocation7]]
    %v82 = vstv %s81
    %v83 = vmul.f32 %v82, %v80
    %v84 = vadd.f32 %v65, %v83
    %s85 = sld [smem:[#allocation5 + $0x1]]
    %s86 = sld [smem:[#allocation3 + $0x1]]
    %v87 = vstv %s86
    %v88 = vmul.f32 %v87, %v57
    %v89 = vstv %s85
    %v90 = vadd.f32 %v89, %v88
    %s91 = sld [smem:[#allocation3 + $0x81]]
    %v92 = vstv %s91
    %v93 = vmul.f32 %v92, %v60
    %v94 = vadd.f32 %v90, %v93
    %s95 = sld [smem:[#allocation3 + $0x101]]
    %v96 = vstv %s95
    %v97 = vmul.f32 %v96, %v63
    %v98 = vadd.f32 %v94, %v97
    %v99 = vmax.f32 %v98, 0.0
    %s100 = sld [smem:[#allocation7 + $0x1]]
    %v101 = vstv %s100
    %v102 = vmul.f32 %v101, %v99
    %v103 = vadd.f32 %v84, %v102
    %s104 = sld [smem:[#allocation5 + $0x2]]
    %s105 = sld [smem:[#allocation3 + $0x2]]
    %v106 = vstv %s105
    %v107 = vmul.f32 %v106, %v57
    %v108 = vstv %s104
    %v109 = vadd.f32 %v108, %v107
    %s110 = sld [smem:[#allocation3 + $0x82]]
    %v111 = vstv %s110
    %v112 = vmul.f32 %v111, %v60
    %v113 = vadd.f32 %v109, %v112
    %s114 = sld [smem:[#allocation3 + $0x102]]
    %v115 = vstv %s114
    %v116 = vmul.f32 %v115, %v63
    %v117 = vadd.f32 %v113, %v116
    %v118 = vmax.f32 %v117, 0.0
    %s119 = sld [smem:[#allocation7 + $0x2]]
    %v120 = vstv %s119
    %v121 = vmul.f32 %v120, %v118
    %v122 = vadd.f32 %v103, %v121
    %s123 = sld [smem:[#allocation5 + $0x3]]
    %s124 = sld [smem:[#allocation3 + $0x3]]
    %v125 = vstv %s124
    %v126 = vmul.f32 %v125, %v57
    %v127 = vstv %s123
    %v128 = vadd.f32 %v127, %v126
    %s129 = sld [smem:[#allocation3 + $0x83]]
    %v130 = vstv %s129
    %v131 = vmul.f32 %v130, %v60
    %v132 = vadd.f32 %v128, %v131
    %s133 = sld [smem:[#allocation3 + $0x103]]
    %v134 = vstv %s133
    %v135 = vmul.f32 %v134, %v63
    %v136 = vadd.f32 %v132, %v135
    %v137 = vmax.f32 %v136, 0.0
    %s138 = sld [smem:[#allocation7 + $0x3]]
    %v139 = vstv %s138
    %v140 = vmul.f32 %v139, %v137
    %v141 = vadd.f32 %v122, %v140
    %s142 = sld [smem:[#allocation5 + $0x4]]
    %s143 = sld [smem:[#allocation3 + $0x4]]
    %v144 = vstv %s143
    %v145 = vmul.f32 %v144, %v57
    %v146 = vstv %s142
    %v147 = vadd.f32 %v146, %v145
    %s148 = sld [smem:[#allocation3 + $0x84]]
    %v149 = vstv %s148
    %v150 = vmul.f32 %v149, %v60
    %v151 = vadd.f32 %v147, %v150
    %s152 = sld [smem:[#allocation3 + $0x104]]
    %v153 = vstv %s152
    %v154 = vmul.f32 %v153, %v63
    %v155 = vadd.f32 %v151, %v154
    %v156 = vmax.f32 %v155, 0.0
    %s157 = sld [smem:[#allocation7 + $0x4]]
    %v158 = vstv %s157
    %v159 = vmul.f32 %v158, %v156
    %v160 = vadd.f32 %v141, %v159
    %s161 = sld [smem:[#allocation5 + $0x5]]
    %s162 = sld [smem:[#allocation3 + $0x5]]
    %v163 = vstv %s162
    %v164 = vmul.f32 %v163, %v57
    %v165 = vstv %s161
    %v166 = vadd.f32 %v165, %v164
    %s167 = sld [smem:[#allocation3 + $0x85]]
    %v168 = vstv %s167
    %v169 = vmul.f32 %v168, %v60
    %v170 = vadd.f32 %v166, %v169
    %s171 = sld [smem:[#allocation3 + $0x105]]
    %v172 = vstv %s171
    %v173 = vmul.f32 %v172, %v63
    %v174 = vadd.f32 %v170, %v173
    %v175 = vmax.f32 %v174, 0.0
    %s176 = sld [smem:[#allocation7 + $0x5]]
    %v177 = vstv %s176
    %v178 = vmul.f32 %v177, %v175
    %v179 = vadd.f32 %v160, %v178
    %s180 = sld [smem:[#allocation5 + $0x6]]
    %s181 = sld [smem:[#allocation3 + $0x6]]
    %v182 = vstv %s181
    %v183 = vmul.f32 %v182, %v57
    %v184 = vstv %s180
    %v185 = vadd.f32 %v184, %v183
    %s186 = sld [smem:[#allocation3 + $0x86]]
    %v187 = vstv %s186
    %v188 = vmul.f32 %v187, %v60
    %v189 = vadd.f32 %v185, %v188
    %s190 = sld [smem:[#allocation3 + $0x106]]
    %v191 = vstv %s190
    %v192 = vmul.f32 %v191, %v63
    %v193 = vadd.f32 %v189, %v192
    %v194 = vmax.f32 %v193, 0.0
    %s195 = sld [smem:[#allocation7 + $0x6]]
    %v196 = vstv %s195
    %v197 = vmul.f32 %v196, %v194
    %v198 = vadd.f32 %v179, %v197
    %s199 = sld [smem:[#allocation5 + $0x7]]
    %s200 = sld [smem:[#allocation3 + $0x7]]
    %v201 = vstv %s200
    %v202 = vmul.f32 %v201, %v57
    %v203 = vstv %s199
    %v204 = vadd.f32 %v203, %v202
    %s205 = sld [smem:[#allocation3 + $0x87]]
    %v206 = vstv %s205
    %v207 = vmul.f32 %v206, %v60
    %v208 = vadd.f32 %v204, %v207
    %s209 = sld [smem:[#allocation3 + $0x107]]
    %v210 = vstv %s209
    %v211 = vmul.f32 %v210, %v63
    %v212 = vadd.f32 %v208, %v211
    %v213 = vmax.f32 %v212, 0.0
    %s214 = sld [smem:[#allocation7 + $0x7]]
    %v215 = vstv %s214
    %v216 = vmul.f32 %v215, %v213
    %v217 = vadd.f32 %v198, %v216
    %v218 = vtanh.pop %v217
    %v219 = vmul.f32 %v218, 0.5
    %v220 = vadd.f32 %v219, 0.5
    %221 = vst [vmem:[%s5] sm:$0xff] %v220
    // Predicated region
    $region34: #{risk_model_forward.1} parent=1 // pred_check
      _
    $region35: #{risk_model_forward.1} parent=1 // pred_check_branch
      %223 = sbr.rel (0) target = $region37
    $region36: #{risk_model_forward.1} parent=1 // pred_region
      _
    $region37: #{risk_model_forward.1} parent=1 // pred_fallthru
      _
    // Predicated region
    $region38: #{risk_model_forward.1} parent=1 // pred_check
      _
    $region39: #{risk_model_forward.1} parent=1 // pred_check_branch
      %225 = sbr.rel (0) target = $region41
    $region40: #{risk_model_forward.1} parent=1 // pred_region
      _
    $region41: #{risk_model_forward.1} parent=1 // pred_fallthru
      _
    %226 = vsyncpa [#allocation4], 1
    %227 = vsyncpa [#allocation6], 1

</llo_original>
